<compile_context>
chip_gen: v6e
topology: v6e:2x2x1
jax: 0.10.0
libtpu: 0.0.40
codegen_flags: <defaults>
</compile_context>

<pallas_src>
import functools

import jax
import jax.numpy as jnp
from jax.experimental import pallas as pl
from jax.experimental.pallas import tpu as pltpu

_IN = 10      # input / reconstruction features
_HID = 128    # hidden width
_CODE = 4     # bottleneck width
_MAX_TB = 1024  # max batch-tile rows (multiple of 256; VMEM-safe on v5e/v6e/v7x)


def _round_up(n, m):
    return ((n + m - 1) // m) * m


def _ae_kernel(x_ref,
               w1_ref, b1_ref,          # (10,128), (1,128)
               w2_ref, b2_ref,          # (128,4),  (1,4)
               w23_ref, b23_ref,        # (128,128),(1,128)   fused w2@w3
               w4_ref, b4_ref,          # (128,10), (1,10)
               recon_ref, enc_ref):
    x = x_ref[...]                                                   # (TB,10) f32

    # ---- encoder ----
    h1 = jnp.dot(x, w1_ref[...], preferred_element_type=jnp.float32) + b1_ref[...]
    h1 = jnp.maximum(h1, 0.0)                                        # ReLU, (TB,128)
    enc = jnp.dot(h1, w2_ref[...], preferred_element_type=jnp.float32) + b2_ref[...]

    # ---- decoder (linear-linear middle fused into one 128x128 matmul) ----
    h2 = jnp.dot(h1, w23_ref[...], preferred_element_type=jnp.float32) + b23_ref[...]
    h2 = jnp.maximum(h2, 0.0)                                        # ReLU, (TB,128)
    rec = jnp.dot(h2, w4_ref[...], preferred_element_type=jnp.float32) + b4_ref[...]

    enc_ref[...] = enc.astype(enc_ref.dtype)
    recon_ref[...] = rec.astype(recon_ref.dtype)


@jax.jit
def autoencoder_forward(x, params):
    """x: (B, 10) float32.  params: dict of (in,out) weights and (1,out) biases.
    Returns (reconstruction (B,10), encoded (B,4)) — same as the torch module."""
    B = x.shape[0]
    w1, b1 = params["w1"], params["b1"]   # (10,128), (1,128)
    w2, b2 = params["w2"], params["b2"]   # (128,4),  (1,4)
    w3, b3 = params["w3"], params["b3"]   # (4,128),  (1,128)
    w4, b4 = params["w4"], params["b4"]   # (128,10), (1,10)

    # Exact algebraic fusion of the two consecutive linear layers (no ReLU between).
    w23 = jnp.dot(w2, w3, preferred_element_type=jnp.float32)        # (128,128)
    b23 = jnp.dot(b2, w3, preferred_element_type=jnp.float32) + b3   # (1,128)

    # Batch tile: multiple of 8 (sublane), capped at _MAX_TB rows.
    TB = min(_MAX_TB, _round_up(B, 8))
    Bp = _round_up(B, TB)
    xp = jnp.pad(x, ((0, Bp - B), (0, 0))) if Bp != B else x
    grid = (Bp // TB,)

    # Weights/biases: same block every step -> stay resident in VMEM.
    const = lambda a: pl.BlockSpec(a.shape, lambda i: (0,) * a.ndim)

    recon_p, enc_p = pl.pallas_call(
        _ae_kernel,
        out_shape=(
            jax.ShapeDtypeStruct((Bp, _IN), jnp.float32),
            jax.ShapeDtypeStruct((Bp, _CODE), jnp.float32),
        ),
        grid=grid,
        in_specs=[
            pl.BlockSpec((TB, _IN), lambda i: (i, 0)),    # x: batch-tiled
            const(w1), const(b1),
            const(w2), const(b2),
            const(w23), const(b23),
            const(w4), const(b4),
        ],
        out_specs=(
            pl.BlockSpec((TB, _IN), lambda i: (i, 0)),
            pl.BlockSpec((TB, _CODE), lambda i: (i, 0)),
        ),
        compiler_params=pltpu.CompilerParams(
            dimension_semantics=("parallel",)),           # v7x megacore; no-op on v5e/v6e
    )(xp, w1, b1, w2, b2, w23, b23, w4, b4)

    return recon_p[:B], enc_p[:B]


def init_params(key):
    """PyTorch-style init: U(-1/sqrt(fan_in), 1/sqrt(fan_in)).
    Weights stored as (in, out) = transpose of torch's (out, in)."""
    def linear(k, fan_in, fan_out):
        kw, kb = jax.random.split(k)
        bound = 1.0 / jnp.sqrt(fan_in)
        w = jax.random.uniform(kw, (fan_in, fan_out), jnp.float32, -bound, bound)
        b = jax.random.uniform(kb, (1, fan_out), jnp.float32, -bound, bound)
        return w, b

    k1, k2, k3, k4 = jax.random.split(key, 4)
    w1, b1 = linear(k1, _IN, _HID)
    w2, b2 = linear(k2, _HID, _CODE)
    w3, b3 = linear(k3, _CODE, _HID)
    w4, b4 = linear(k4, _HID, _IN)
    return {"w1": w1, "b1": b1, "w2": w2, "b2": b2,
            "w3": w3, "b3": b3, "w4": w4, "b4": b4}


def _reference(x, p):
    """Unfused reference = exact torch forward semantics."""
    h1 = jnp.maximum(x @ p["w1"] + p["b1"], 0.0)
    enc = h1 @ p["w2"] + p["b2"]
    h2 = jnp.maximum(enc @ p["w3"] + p["b3"], 0.0)
    rec = h2 @ p["w4"] + p["b4"]
    return rec, enc


if __name__ == "__main__":
    key = jax.random.PRNGKey(0)
    kx, kx2, kp = jax.random.split(key, 3)
    params = init_params(kp)

    # --- small-shape check (single grid step, TB = 8) ---
    B = 8
    x = jax.random.normal(kx, (B, _IN), jnp.float32)
    recon, enc = jax.block_until_ready(autoencoder_forward(x, params))
    ref_rec, ref_enc = _reference(x, params)
    assert recon.shape == (B, _IN) and enc.shape == (B, _CODE)
    assert jnp.allclose(recon, ref_rec, atol=1e-4, rtol=1e-4)
    assert jnp.allclose(enc, ref_enc, atol=1e-4, rtol=1e-4)

    # --- multi-tile check (exercises batch grid, padding, parallel semantics) ---
    B2 = 2500  # -> TB=1024, padded to 3072, grid=(3,)
    x2 = jax.random.normal(kx2, (B2, _IN), jnp.float32)
    recon2, enc2 = jax.block_until_ready(autoencoder_forward(x2, params))
    ref_rec2, ref_enc2 = _reference(x2, params)
    assert recon2.shape == (B2, _IN) and enc2.shape == (B2, _CODE)
    assert jnp.allclose(recon2, ref_rec2, atol=1e-4, rtol=1e-4)
    assert jnp.allclose(enc2, ref_enc2, atol=1e-4, rtol=1e-4)

    print("KERNEL_OK")
</pallas_src>

<mosaic_0001>
module attributes {stable_mosaic.version = 11 : i64} {
  func.func @_ae_kernel(%arg0: i32, %arg1: memref<8x10xf32, #tpu.memory_space<vmem>>, %arg2: memref<10x128xf32, #tpu.memory_space<vmem>>, %arg3: memref<1x128xf32, #tpu.memory_space<vmem>>, %arg4: memref<128x4xf32, #tpu.memory_space<vmem>>, %arg5: memref<1x4xf32, #tpu.memory_space<vmem>>, %arg6: memref<128x128xf32, #tpu.memory_space<vmem>>, %arg7: memref<1x128xf32, #tpu.memory_space<vmem>>, %arg8: memref<128x10xf32, #tpu.memory_space<vmem>>, %arg9: memref<1x10xf32, #tpu.memory_space<vmem>>, %arg10: memref<8x10xf32, #tpu.memory_space<vmem>>, %arg11: memref<8x4xf32, #tpu.memory_space<vmem>>) attributes {dimension_semantics = [#tpu.dimension_semantics<parallel>], iteration_bounds = array<i64: 1>, scalar_prefetch = 0 : i64, scratch_operands = 0 : i64, tpu.core_type = #tpu.core_type<tc>, window_params = [{transform_indices = @transform_0, window_bounds = array<i64: 8, 10>}, {pipeline_mode = #tpu.pipeline_mode<synchronous>, transform_indices = @transform_1, window_bounds = array<i64: 10, 128>}, {pipeline_mode = #tpu.pipeline_mode<synchronous>, transform_indices = @transform_2, window_bounds = array<i64: 1, 128>}, {pipeline_mode = #tpu.pipeline_mode<synchronous>, transform_indices = @transform_3, window_bounds = array<i64: 128, 4>}, {pipeline_mode = #tpu.pipeline_mode<synchronous>, transform_indices = @transform_4, window_bounds = array<i64: 1, 4>}, {pipeline_mode = #tpu.pipeline_mode<synchronous>, transform_indices = @transform_5, window_bounds = array<i64: 128, 128>}, {pipeline_mode = #tpu.pipeline_mode<synchronous>, transform_indices = @transform_6, window_bounds = array<i64: 1, 128>}, {pipeline_mode = #tpu.pipeline_mode<synchronous>, transform_indices = @transform_7, window_bounds = array<i64: 128, 10>}, {pipeline_mode = #tpu.pipeline_mode<synchronous>, transform_indices = @transform_8, window_bounds = array<i64: 1, 10>}, {transform_indices = @transform_9, window_bounds = array<i64: 8, 10>}, {transform_indices = @transform_10, window_bounds = array<i64: 8, 4>}]} {
    %c0 = arith.constant 0 : index
    %c0_0 = arith.constant 0 : index
    %0 = vector.load %arg1[%c0, %c0_0] : memref<8x10xf32, #tpu.memory_space<vmem>>, vector<8x10xf32>
    %c0_1 = arith.constant 0 : index
    %c0_2 = arith.constant 0 : index
    %1 = vector.load %arg2[%c0_1, %c0_2] : memref<10x128xf32, #tpu.memory_space<vmem>>, vector<10x128xf32>
    %cst = arith.constant dense<0.000000e+00> : vector<8x128xf32>
    %2 = tpu.matmul %0, %1, %cst {dimension_numbers = #tpu.dot_dimension_numbers<[1], [0], [0], [1], [0, 0, 1, 1], [], []>} : vector<8x10xf32>, vector<10x128xf32>, vector<8x128xf32> -> vector<8x128xf32>
    %c0_3 = arith.constant 0 : index
    %c0_4 = arith.constant 0 : index
    %3 = vector.load %arg3[%c0_3, %c0_4] : memref<1x128xf32, #tpu.memory_space<vmem>>, vector<1x128xf32>
    %4 = vector.broadcast %3 : vector<1x128xf32> to vector<8x128xf32>
    %5 = arith.addf %2, %4 : vector<8x128xf32>
    %cst_5 = arith.constant 0.000000e+00 : f32
    %6 = vector.broadcast %cst_5 : f32 to vector<8x128xf32>
    %7 = arith.maximumf %5, %6 : vector<8x128xf32>
    %c0_6 = arith.constant 0 : index
    %c0_7 = arith.constant 0 : index
    %8 = vector.load %arg4[%c0_6, %c0_7] : memref<128x4xf32, #tpu.memory_space<vmem>>, vector<128x4xf32>
    %cst_8 = arith.constant dense<0.000000e+00> : vector<8x4xf32>
    %9 = tpu.matmul %7, %8, %cst_8 {dimension_numbers = #tpu.dot_dimension_numbers<[1], [0], [0], [1], [0, 0, 1, 1], [], []>} : vector<8x128xf32>, vector<128x4xf32>, vector<8x4xf32> -> vector<8x4xf32>
    %c0_9 = arith.constant 0 : index
    %c0_10 = arith.constant 0 : index
    %10 = vector.load %arg5[%c0_9, %c0_10] : memref<1x4xf32, #tpu.memory_space<vmem>>, vector<1x4xf32>
    %11 = vector.broadcast %10 : vector<1x4xf32> to vector<8x4xf32>
    %12 = arith.addf %9, %11 : vector<8x4xf32>
    %c0_11 = arith.constant 0 : index
    %c0_12 = arith.constant 0 : index
    %13 = vector.load %arg6[%c0_11, %c0_12] : memref<128x128xf32, #tpu.memory_space<vmem>>, vector<128x128xf32>
    %cst_13 = arith.constant dense<0.000000e+00> : vector<8x128xf32>
    %14 = tpu.matmul %7, %13, %cst_13 {dimension_numbers = #tpu.dot_dimension_numbers<[1], [0], [0], [1], [0, 0, 1, 1], [], []>} : vector<8x128xf32>, vector<128x128xf32>, vector<8x128xf32> -> vector<8x128xf32>
    %c0_14 = arith.constant 0 : index
    %c0_15 = arith.constant 0 : index
    %15 = vector.load %arg7[%c0_14, %c0_15] : memref<1x128xf32, #tpu.memory_space<vmem>>, vector<1x128xf32>
    %16 = vector.broadcast %15 : vector<1x128xf32> to vector<8x128xf32>
    %17 = arith.addf %14, %16 : vector<8x128xf32>
    %cst_16 = arith.constant 0.000000e+00 : f32
    %18 = vector.broadcast %cst_16 : f32 to vector<8x128xf32>
    %19 = arith.maximumf %17, %18 : vector<8x128xf32>
    %c0_17 = arith.constant 0 : index
    %c0_18 = arith.constant 0 : index
    %20 = vector.load %arg8[%c0_17, %c0_18] : memref<128x10xf32, #tpu.memory_space<vmem>>, vector<128x10xf32>
    %cst_19 = arith.constant dense<0.000000e+00> : vector<8x10xf32>
    %21 = tpu.matmul %19, %20, %cst_19 {dimension_numbers = #tpu.dot_dimension_numbers<[1], [0], [0], [1], [0, 0, 1, 1], [], []>} : vector<8x128xf32>, vector<128x10xf32>, vector<8x10xf32> -> vector<8x10xf32>
    %c0_20 = arith.constant 0 : index
    %c0_21 = arith.constant 0 : index
    %22 = vector.load %arg9[%c0_20, %c0_21] : memref<1x10xf32, #tpu.memory_space<vmem>>, vector<1x10xf32>
    %23 = vector.broadcast %22 : vector<1x10xf32> to vector<8x10xf32>
    %24 = arith.addf %21, %23 : vector<8x10xf32>
    %c0_22 = arith.constant 0 : index
    %c0_23 = arith.constant 0 : index
    %25 = vector.load %arg11[%c0_22, %c0_23] : memref<8x4xf32, #tpu.memory_space<vmem>>, vector<8x4xf32>
    tpu.vector_store %arg11[%c0_22, %c0_23], %12 {strides = array<i32>} : memref<8x4xf32, #tpu.memory_space<vmem>>, vector<8x4xf32>,
    %c0_24 = arith.constant 0 : index
    %c0_25 = arith.constant 0 : index
    %26 = vector.load %arg10[%c0_24, %c0_25] : memref<8x10xf32, #tpu.memory_space<vmem>>, vector<8x10xf32>
    tpu.vector_store %arg10[%c0_24, %c0_25], %24 {strides = array<i32>} : memref<8x10xf32, #tpu.memory_space<vmem>>, vector<8x10xf32>,
    return
  }
  func.func @transform_0(%arg0: i32) -> (i32, i32) {
    %c0_i32 = arith.constant 0 : i32
    %c0_i32_0 = arith.constant 0 : i32
    return %arg0, %c0_i32 : i32, i32
  }
  func.func @transform_1(%arg0: i32) -> (i32, i32) {
    %c0_i32 = arith.constant 0 : i32
    %c0_i32_0 = arith.constant 0 : i32
    %c0_i32_1 = arith.constant 0 : i32
    return %c0_i32, %c0_i32_0 : i32, i32
  }
  func.func @transform_2(%arg0: i32) -> (i32, i32) {
    %c0_i32 = arith.constant 0 : i32
    %c0_i32_0 = arith.constant 0 : i32
    %c0_i32_1 = arith.constant 0 : i32
    return %c0_i32, %c0_i32_0 : i32, i32
  }
  func.func @transform_3(%arg0: i32) -> (i32, i32) {
    %c0_i32 = arith.constant 0 : i32
    %c0_i32_0 = arith.constant 0 : i32
    %c0_i32_1 = arith.constant 0 : i32
    return %c0_i32, %c0_i32_0 : i32, i32
  }
  func.func @transform_4(%arg0: i32) -> (i32, i32) {
    %c0_i32 = arith.constant 0 : i32
    %c0_i32_0 = arith.constant 0 : i32
    %c0_i32_1 = arith.constant 0 : i32
    return %c0_i32, %c0_i32_0 : i32, i32
  }
  func.func @transform_5(%arg0: i32) -> (i32, i32) {
    %c0_i32 = arith.constant 0 : i32
    %c0_i32_0 = arith.constant 0 : i32
    %c0_i32_1 = arith.constant 0 : i32
    return %c0_i32, %c0_i32_0 : i32, i32
  }
  func.func @transform_6(%arg0: i32) -> (i32, i32) {
    %c0_i32 = arith.constant 0 : i32
    %c0_i32_0 = arith.constant 0 : i32
    %c0_i32_1 = arith.constant 0 : i32
    return %c0_i32, %c0_i32_0 : i32, i32
  }
  func.func @transform_7(%arg0: i32) -> (i32, i32) {
    %c0_i32 = arith.constant 0 : i32
    %c0_i32_0 = arith.constant 0 : i32
    %c0_i32_1 = arith.constant 0 : i32
    return %c0_i32, %c0_i32_0 : i32, i32
  }
  func.func @transform_8(%arg0: i32) -> (i32, i32) {
    %c0_i32 = arith.constant 0 : i32
    %c0_i32_0 = arith.constant 0 : i32
    %c0_i32_1 = arith.constant 0 : i32
    return %c0_i32, %c0_i32_0 : i32, i32
  }
  func.func @transform_9(%arg0: i32) -> (i32, i32) {
    %c0_i32 = arith.constant 0 : i32
    %c0_i32_0 = arith.constant 0 : i32
    return %arg0, %c0_i32 : i32, i32
  }
  func.func @transform_10(%arg0: i32) -> (i32, i32) {
    %c0_i32 = arith.constant 0 : i32
    %c0_i32_0 = arith.constant 0 : i32
    return %arg0, %c0_i32 : i32, i32
  }
}

</mosaic_0001>

<llo_original>
// kernel: autoencoder_forward.1
$region0: #{autoencoder_forward.1}
  #allocation0 [shape = 'u32[]', space=smem, size = 0x4, offset = 0x4, fixed_abs, tag = 'smem constant byte address 0x4 - core index']
  #allocation1 [shape = 'u32[144,128]{1,0:T(1,128)}', space=vmem, size = 0x12000, scoped, tag = 'internal scratch']
  %s0 = inlined_call_operand.vmem [shape: f32[8,10], index: 0, kind: input, shape index: {}]
  %s1 = inlined_call_operand.vmem [shape: f32[10,128], index: 1, kind: input, shape index: {}]
  %s2 = inlined_call_operand.vmem [shape: f32[1,128], index: 2, kind: input, shape index: {}]
  %s3 = inlined_call_operand.vmem [shape: f32[128,4], index: 3, kind: input, shape index: {}]
  %s4 = inlined_call_operand.vmem [shape: f32[1,4], index: 4, kind: input, shape index: {}]
  %s5 = inlined_call_operand.vmem [shape: f32[128,128], index: 5, kind: input, shape index: {}]
  %s6 = inlined_call_operand.vmem [shape: f32[1,128], index: 6, kind: input, shape index: {}]
  %s7 = inlined_call_operand.vmem [shape: f32[128,10], index: 7, kind: input, shape index: {}]
  %s8 = inlined_call_operand.vmem [shape: f32[1,10], index: 8, kind: input, shape index: {}]
  %s9 = inlined_call_operand.hbm [shape: f32[8,10], index: 9, kind: output, shape index: {0}]
  %s10 = inlined_call_operand.vmem [shape: f32[8,4], index: 10, kind: output, shape index: {1}]
  %11 = xla_tuple %s9, %s10
  %s12 = sld [smem:[#allocation0]]
  $region54: #{autoencoder_forward.1} parent=0
    _
  %s14 = ssub.s32 1, %s12
  %s15 = scalar_select 0, %s14, %s12
  $region1: #{autoencoder_forward.1} parent=0
    #allocation2 [shape = 'u8[4096]{0}', space=vmem, size = 0x1000, scoped, tag = 'output window, operand 0, single buffered']
    #allocation3 [shape = 's32[1]{0}', space=sflag, size = 0x4, scoped, tag = 'scoped memory for autoencoder_forward.1']
    %16 = vsyncpa [#allocation3], 0
    // Predicated region
    $region2: #{autoencoder_forward.1} parent=1 // pred_check
      _
    $region3: #{autoencoder_forward.1} parent=1 // pred_check_branch
      %18 = sbr.rel (0) target = $region5
    $region4: #{autoencoder_forward.1} parent=1 // pred_region
      _
    $region5: #{autoencoder_forward.1} parent=1 // pred_fallthru
      _
    // Predicated region
    $region6: #{autoencoder_forward.1} parent=1 // pred_check
      _
    $region7: #{autoencoder_forward.1} parent=1 // pred_check_branch
      %20 = sbr.rel (0) target = $region9
    $region8: #{autoencoder_forward.1} parent=1 // pred_region
      _
    $region9: #{autoencoder_forward.1} parent=1 // pred_fallthru
      _
    // Predicated region
    $region10: #{autoencoder_forward.1} parent=1 // pred_check
      _
    $region11: #{autoencoder_forward.1} parent=1 // pred_check_branch
      %22 = sbr.rel (0) target = $region13
    $region12: #{autoencoder_forward.1} parent=1 // pred_region
      _
    $region13: #{autoencoder_forward.1} parent=1 // pred_fallthru
      _
    // Predicated region
    $region14: #{autoencoder_forward.1} parent=1 // pred_check
      _
    $region15: #{autoencoder_forward.1} parent=1 // pred_check_branch
      %24 = sbr.rel (0) target = $region17
    $region16: #{autoencoder_forward.1} parent=1 // pred_region
      _
    $region17: #{autoencoder_forward.1} parent=1 // pred_fallthru
      _
    // Predicated region
    $region18: #{autoencoder_forward.1} parent=1 // pred_check
      _
    $region19: #{autoencoder_forward.1} parent=1 // pred_check_branch
      %26 = sbr.rel (0) target = $region21
    $region20: #{autoencoder_forward.1} parent=1 // pred_region
      _
    $region21: #{autoencoder_forward.1} parent=1 // pred_fallthru
      _
    // Predicated region
    $region22: #{autoencoder_forward.1} parent=1 // pred_check
      _
    $region23: #{autoencoder_forward.1} parent=1 // pred_check_branch
      %28 = sbr.rel (0) target = $region25
    $region24: #{autoencoder_forward.1} parent=1 // pred_region
      _
    $region25: #{autoencoder_forward.1} parent=1 // pred_fallthru
      _
    // Predicated region
    $region26: #{autoencoder_forward.1} parent=1 // pred_check
      _
    $region27: #{autoencoder_forward.1} parent=1 // pred_check_branch
      %30 = sbr.rel (0) target = $region29
    $region28: #{autoencoder_forward.1} parent=1 // pred_region
      _
    $region29: #{autoencoder_forward.1} parent=1 // pred_fallthru
      _
    // Predicated region
    $region30: #{autoencoder_forward.1} parent=1 // pred_check
      _
    $region31: #{autoencoder_forward.1} parent=1 // pred_check_branch
      %32 = sbr.rel (0) target = $region33
    $region32: #{autoencoder_forward.1} parent=1 // pred_region
      _
    $region33: #{autoencoder_forward.1} parent=1 // pred_fallthru
      _
    // Predicated region
    $region34: #{autoencoder_forward.1} parent=1 // pred_check
      _
    $region35: #{autoencoder_forward.1} parent=1 // pred_check_branch
      %34 = sbr.rel (0) target = $region37
    $region36: #{autoencoder_forward.1} parent=1 // pred_region
      _
    $region37: #{autoencoder_forward.1} parent=1 // pred_fallthru
      _
    %v35 = vld [vmem:[%s0] sm:$0xff]
    %v36 = vld [vmem:[%s1] sm:$0xff]
    %v37 = vld [vmem:[%s1 + $0x8] sm:$0x3]
    %v38 = vld [vmem:[%s2] sm:$0x1]
    %v40 = vlaneseq
    %v41 = vshrl.u32 %v40, 7
    %v42 = vsub.s32 0, %v41
    %v43 = vrot.slane %v38, %v42
    %vm45 = vcmask 80896
    %v47 = vsel %vm45, %v35, 0
    %vm49 = vcmask 1041408
    %v51 = vsel %vm49, %v37, 0
    %53 = vmatprep.subr.mxu0 0.0
    %54 = vmatpush1.msra.mxu0 0.0
    %55 = vmatprep.subr.mxu0 0.0
    %56 = vmatpush1.msra.mxu0 0.0
    %57 = vmatprep.subr.mxu0 0.0
    %58 = vmatpush1.msra.mxu0 0.0
    %59 = vmatprep.subr.mxu0 0.0
    %60 = vmatpush1.msra.mxu0 0.0
    %61 = vmatprep.subr.mxu0 0.0
    %62 = vmatpush1.msra.mxu0 0.0
    %63 = vmatprep.subr.mxu0 0.0
    %64 = vmatpush1.msra.mxu0 0.0
    %65 = vmatprep.subr.mxu0 0.0
    %66 = vmatpush1.msra.mxu0 0.0
    %67 = vmatprep.subr.mxu0 0.0
    %68 = vmatpush1.msra.mxu0 0.0
    %69 = vmatprep.subr.mxu0 0.0
    %70 = vmatpush1.msra.mxu0 0.0
    %71 = vmatprep.subr.mxu0 0.0
    %72 = vmatpush1.msra.mxu0 0.0
    %73 = vmatprep.subr.mxu0 0.0
    %74 = vmatpush1.msra.mxu0 0.0
    %75 = vmatprep.subr.mxu0 0.0
    %76 = vmatpush1.msra.mxu0 0.0
    %77 = vmatprep.subr.mxu0 0.0
    %78 = vmatpush1.msra.mxu0 0.0
    %79 = vmatprep.subr.mxu0 0.0
    %80 = vmatpush1.msra.mxu0 0.0
    %81 = vmatprep.subr.mxu0 0.0
    %82 = vmatpush1.msra.mxu0 %v51
    %83 = vmatprep.subr.mxu0 0.0
    %84 = vmatpush1.msra.mxu0 %v36
    %85 = vmatprep.subr.mxu0 0.0
    %86 = vmatpush2.msra.mxu0 0.0
    %87 = vmatprep.subr.mxu0 0.0
    %88 = vmatpush2.msra.mxu0 0.0
    %89 = vmatprep.subr.mxu0 0.0
    %90 = vmatpush2.msra.mxu0 0.0
    %91 = vmatprep.subr.mxu0 0.0
    %92 = vmatpush2.msra.mxu0 0.0
    %93 = vmatprep.subr.mxu0 0.0
    %94 = vmatpush2.msra.mxu0 0.0
    %95 = vmatprep.subr.mxu0 0.0
    %96 = vmatpush2.msra.mxu0 0.0
    %97 = vmatprep.subr.mxu0 0.0
    %98 = vmatpush2.msra.mxu0 0.0
    %99 = vmatprep.subr.mxu0 0.0
    %100 = vmatpush2.msra.mxu0 0.0
    %101 = vmatprep.subr.mxu0 0.0
    %102 = vmatpush2.msra.mxu0 0.0
    %103 = vmatprep.subr.mxu0 0.0
    %104 = vmatpush2.msra.mxu0 0.0
    %105 = vmatprep.subr.mxu0 0.0
    %106 = vmatpush2.msra.mxu0 0.0
    %107 = vmatprep.subr.mxu0 0.0
    %108 = vmatpush2.msra.mxu0 0.0
    %109 = vmatprep.subr.mxu0 0.0
    %110 = vmatpush2.msra.mxu0 0.0
    %111 = vmatprep.subr.mxu0 0.0
    %112 = vmatpush2.msra.mxu0 0.0
    %113 = vmatprep.subr.mxu0 0.0
    %114 = vmatpush2.msra.mxu0 0.0
    %115 = vmatprep.subr.mxu0 0.0
    %116 = vmatpush2.msra.mxu0 0.0
    %117 = vmatprep.mubr.f32.mxu0 0.0
    %118 = vmatmul.mubr.f32.gmra.mxu0 %v47
    %v119 = vpop.f32.mrf.mxu0
    %v120 = vadd.f32 %v43, %v119
    %v121 = vpop.f32.mrf.mxu0
    %122 = vdwg.mxu0
    %v123 = vmax.f32 %v120, 0.0
    %v124 = vld [vmem:[%s3] sm:$0xff]
    %v125 = vld [vmem:[%s3 + $0x8] sm:$0xff]
    %v126 = vld [vmem:[%s3 + $0x10] sm:$0xff]
    %v127 = vld [vmem:[%s3 + $0x18] sm:$0xff]
    %v128 = vld [vmem:[%s3 + $0x20] sm:$0xff]
    %v129 = vld [vmem:[%s3 + $0x28] sm:$0xff]
    %v130 = vld [vmem:[%s3 + $0x30] sm:$0xff]
    %v131 = vld [vmem:[%s3 + $0x38] sm:$0xff]
    %v132 = vld [vmem:[%s3 + $0x40] sm:$0xff]
    %v133 = vld [vmem:[%s3 + $0x48] sm:$0xff]
    %v134 = vld [vmem:[%s3 + $0x50] sm:$0xff]
    %v135 = vld [vmem:[%s3 + $0x58] sm:$0xff]
    %v136 = vld [vmem:[%s3 + $0x60] sm:$0xff]
    %v137 = vld [vmem:[%s3 + $0x68] sm:$0xff]
    %v138 = vld [vmem:[%s3 + $0x70] sm:$0xff]
    %v139 = vld [vmem:[%s3 + $0x78] sm:$0xff]
    %v140 = vld [vmem:[%s4] sm:$0x1]
    %v142 = vlaneseq
    %v143 = vshrl.u32 %v142, 7
    %v144 = vsub.s32 0, %v143
    %v145 = vrot.slane %v140, %v144
    %147 = vmatprep.subr.mxu0 0.0
    %148 = vmatpush1.msra.mxu0 %v139
    %149 = vmatprep.subr.mxu0 0.0
    %150 = vmatpush1.msra.mxu0 %v138
    %151 = vmatprep.subr.mxu0 0.0
    %152 = vmatpush1.msra.mxu0 %v137
    %153 = vmatprep.subr.mxu0 0.0
    %154 = vmatpush1.msra.mxu0 %v136
    %155 = vmatprep.subr.mxu0 0.0
    %156 = vmatpush1.msra.mxu0 %v135
    %157 = vmatprep.subr.mxu0 0.0
    %158 = vmatpush1.msra.mxu0 %v134
    %159 = vmatprep.subr.mxu0 0.0
    %160 = vmatpush1.msra.mxu0 %v133
    %161 = vmatprep.subr.mxu0 0.0
    %162 = vmatpush1.msra.mxu0 %v132
    %163 = vmatprep.subr.mxu0 0.0
    %164 = vmatpush1.msra.mxu0 %v131
    %165 = vmatprep.subr.mxu0 0.0
    %166 = vmatpush1.msra.mxu0 %v130
    %167 = vmatprep.subr.mxu0 0.0
    %168 = vmatpush1.msra.mxu0 %v129
    %169 = vmatprep.subr.mxu0 0.0
    %170 = vmatpush1.msra.mxu0 %v128
    %171 = vmatprep.subr.mxu0 0.0
    %172 = vmatpush1.msra.mxu0 %v127
    %173 = vmatprep.subr.mxu0 0.0
    %174 = vmatpush1.msra.mxu0 %v126
    %175 = vmatprep.subr.mxu0 0.0
    %176 = vmatpush1.msra.mxu0 %v125
    %177 = vmatprep.subr.mxu0 0.0
    %178 = vmatpush1.msra.mxu0 %v124
    %179 = vmatprep.subr.mxu0 0.0
    %180 = vmatpush2.msra.mxu0 0.0
    %181 = vmatprep.subr.mxu0 0.0
    %182 = vmatpush2.msra.mxu0 0.0
    %183 = vmatprep.subr.mxu0 0.0
    %184 = vmatpush2.msra.mxu0 0.0
    %185 = vmatprep.subr.mxu0 0.0
    %186 = vmatpush2.msra.mxu0 0.0
    %187 = vmatprep.subr.mxu0 0.0
    %188 = vmatpush2.msra.mxu0 0.0
    %189 = vmatprep.subr.mxu0 0.0
    %190 = vmatpush2.msra.mxu0 0.0
    %191 = vmatprep.subr.mxu0 0.0
    %192 = vmatpush2.msra.mxu0 0.0
    %193 = vmatprep.subr.mxu0 0.0
    %194 = vmatpush2.msra.mxu0 0.0
    %195 = vmatprep.subr.mxu0 0.0
    %196 = vmatpush2.msra.mxu0 0.0
    %197 = vmatprep.subr.mxu0 0.0
    %198 = vmatpush2.msra.mxu0 0.0
    %199 = vmatprep.subr.mxu0 0.0
    %200 = vmatpush2.msra.mxu0 0.0
    %201 = vmatprep.subr.mxu0 0.0
    %202 = vmatpush2.msra.mxu0 0.0
    %203 = vmatprep.subr.mxu0 0.0
    %204 = vmatpush2.msra.mxu0 0.0
    %205 = vmatprep.subr.mxu0 0.0
    %206 = vmatpush2.msra.mxu0 0.0
    %207 = vmatprep.subr.mxu0 0.0
    %208 = vmatpush2.msra.mxu0 0.0
    %209 = vmatprep.subr.mxu0 0.0
    %210 = vmatpush2.msra.mxu0 0.0
    %211 = vmatprep.mubr.f32.mxu0 0.0
    %212 = vmatmul.mubr.f32.gmra.mxu0 %v123
    %v213 = vpop.f32.mrf.mxu0
    %v214 = vadd.f32 %v145, %v213
    %v215 = vpop.f32.mrf.mxu0
    %216 = vdwg.mxu0
    %v217 = vld [vmem:[%s5] sm:$0xff]
    %v218 = vld [vmem:[%s5 + $0x8] sm:$0xff]
    %v219 = vld [vmem:[%s5 + $0x10] sm:$0xff]
    %v220 = vld [vmem:[%s5 + $0x18] sm:$0xff]
    %v221 = vld [vmem:[%s5 + $0x20] sm:$0xff]
    %v222 = vld [vmem:[%s5 + $0x28] sm:$0xff]
    %v223 = vld [vmem:[%s5 + $0x30] sm:$0xff]
    %v224 = vld [vmem:[%s5 + $0x38] sm:$0xff]
    %v225 = vld [vmem:[%s5 + $0x40] sm:$0xff]
    %v226 = vld [vmem:[%s5 + $0x48] sm:$0xff]
    %v227 = vld [vmem:[%s5 + $0x50] sm:$0xff]
    %v228 = vld [vmem:[%s5 + $0x58] sm:$0xff]
    %v229 = vld [vmem:[%s5 + $0x60] sm:$0xff]
    %v230 = vld [vmem:[%s5 + $0x68] sm:$0xff]
    %v231 = vld [vmem:[%s5 + $0x70] sm:$0xff]
    %v232 = vld [vmem:[%s5 + $0x78] sm:$0xff]
    %v233 = vld [vmem:[%s6] sm:$0x1]
    %v235 = vlaneseq
    %v236 = vshrl.u32 %v235, 7
    %v237 = vsub.s32 0, %v236
    %v238 = vrot.slane %v233, %v237
    %240 = vmatprep.subr.mxu0 0.0
    %241 = vmatpush1.msra.mxu0 %v232
    %242 = vmatprep.subr.mxu0 0.0
    %243 = vmatpush1.msra.mxu0 %v231
    %244 = vmatprep.subr.mxu0 0.0
    %245 = vmatpush1.msra.mxu0 %v230
    %246 = vmatprep.subr.mxu0 0.0
    %247 = vmatpush1.msra.mxu0 %v229
    %248 = vmatprep.subr.mxu0 0.0
    %249 = vmatpush1.msra.mxu0 %v228
    %250 = vmatprep.subr.mxu0 0.0
    %251 = vmatpush1.msra.mxu0 %v227
    %252 = vmatprep.subr.mxu0 0.0
    %253 = vmatpush1.msra.mxu0 %v226
    %254 = vmatprep.subr.mxu0 0.0
    %255 = vmatpush1.msra.mxu0 %v225
    %256 = vmatprep.subr.mxu0 0.0
    %257 = vmatpush1.msra.mxu0 %v224
    %258 = vmatprep.subr.mxu0 0.0
    %259 = vmatpush1.msra.mxu0 %v223
    %260 = vmatprep.subr.mxu0 0.0
    %261 = vmatpush1.msra.mxu0 %v222
    %262 = vmatprep.subr.mxu0 0.0
    %263 = vmatpush1.msra.mxu0 %v221
    %264 = vmatprep.subr.mxu0 0.0
    %265 = vmatpush1.msra.mxu0 %v220
    %266 = vmatprep.subr.mxu0 0.0
    %267 = vmatpush1.msra.mxu0 %v219
    %268 = vmatprep.subr.mxu0 0.0
    %269 = vmatpush1.msra.mxu0 %v218
    %270 = vmatprep.subr.mxu0 0.0
    %271 = vmatpush1.msra.mxu0 %v217
    %272 = vmatprep.subr.mxu0 0.0
    %273 = vmatpush2.msra.mxu0 0.0
    %274 = vmatprep.subr.mxu0 0.0
    %275 = vmatpush2.msra.mxu0 0.0
    %276 = vmatprep.subr.mxu0 0.0
    %277 = vmatpush2.msra.mxu0 0.0
    %278 = vmatprep.subr.mxu0 0.0
    %279 = vmatpush2.msra.mxu0 0.0
    %280 = vmatprep.subr.mxu0 0.0
    %281 = vmatpush2.msra.mxu0 0.0
    %282 = vmatprep.subr.mxu0 0.0
    %283 = vmatpush2.msra.mxu0 0.0
    %284 = vmatprep.subr.mxu0 0.0
    %285 = vmatpush2.msra.mxu0 0.0
    %286 = vmatprep.subr.mxu0 0.0
    %287 = vmatpush2.msra.mxu0 0.0
    %288 = vmatprep.subr.mxu0 0.0
    %289 = vmatpush2.msra.mxu0 0.0
    %290 = vmatprep.subr.mxu0 0.0
    %291 = vmatpush2.msra.mxu0 0.0
    %292 = vmatprep.subr.mxu0 0.0
    %293 = vmatpush2.msra.mxu0 0.0
    %294 = vmatprep.subr.mxu0 0.0
    %295 = vmatpush2.msra.mxu0 0.0
    %296 = vmatprep.subr.mxu0 0.0
    %297 = vmatpush2.msra.mxu0 0.0
    %298 = vmatprep.subr.mxu0 0.0
    %299 = vmatpush2.msra.mxu0 0.0
    %300 = vmatprep.subr.mxu0 0.0
    %301 = vmatpush2.msra.mxu0 0.0
    %302 = vmatprep.subr.mxu0 0.0
    %303 = vmatpush2.msra.mxu0 0.0
    %304 = vmatprep.mubr.f32.mxu0 0.0
    %305 = vmatmul.mubr.f32.gmra.mxu0 %v123
    %v306 = vpop.f32.mrf.mxu0
    %v307 = vadd.f32 %v238, %v306
    %v308 = vpop.f32.mrf.mxu0
    %309 = vdwg.mxu0
    %v310 = vmax.f32 %v307, 0.0
    %v311 = vld [vmem:[%s7] sm:$0xff]
    %v312 = vld [vmem:[%s7 + $0x8] sm:$0xff]
    %v313 = vld [vmem:[%s7 + $0x10] sm:$0xff]
    %v314 = vld [vmem:[%s7 + $0x18] sm:$0xff]
    %v315 = vld [vmem:[%s7 + $0x20] sm:$0xff]
    %v316 = vld [vmem:[%s7 + $0x28] sm:$0xff]
    %v317 = vld [vmem:[%s7 + $0x30] sm:$0xff]
    %v318 = vld [vmem:[%s7 + $0x38] sm:$0xff]
    %v319 = vld [vmem:[%s7 + $0x40] sm:$0xff]
    %v320 = vld [vmem:[%s7 + $0x48] sm:$0xff]
    %v321 = vld [vmem:[%s7 + $0x50] sm:$0xff]
    %v322 = vld [vmem:[%s7 + $0x58] sm:$0xff]
    %v323 = vld [vmem:[%s7 + $0x60] sm:$0xff]
    %v324 = vld [vmem:[%s7 + $0x68] sm:$0xff]
    %v325 = vld [vmem:[%s7 + $0x70] sm:$0xff]
    %v326 = vld [vmem:[%s7 + $0x78] sm:$0xff]
    %v327 = vld [vmem:[%s8] sm:$0x1]
    %v329 = vlaneseq
    %v330 = vshrl.u32 %v329, 7
    %v331 = vsub.s32 0, %v330
    %v332 = vrot.slane %v327, %v331
    %334 = vmatprep.subr.mxu0 0.0
    %335 = vmatpush1.msra.mxu0 %v326
    %336 = vmatprep.subr.mxu0 0.0
    %337 = vmatpush1.msra.mxu0 %v325
    %338 = vmatprep.subr.mxu0 0.0
    %339 = vmatpush1.msra.mxu0 %v324
    %340 = vmatprep.subr.mxu0 0.0
    %341 = vmatpush1.msra.mxu0 %v323
    %342 = vmatprep.subr.mxu0 0.0
    %343 = vmatpush1.msra.mxu0 %v322
    %344 = vmatprep.subr.mxu0 0.0
    %345 = vmatpush1.msra.mxu0 %v321
    %346 = vmatprep.subr.mxu0 0.0
    %347 = vmatpush1.msra.mxu0 %v320
    %348 = vmatprep.subr.mxu0 0.0
    %349 = vmatpush1.msra.mxu0 %v319
    %350 = vmatprep.subr.mxu0 0.0
    %351 = vmatpush1.msra.mxu0 %v318
    %352 = vmatprep.subr.mxu0 0.0
    %353 = vmatpush1.msra.mxu0 %v317
    %354 = vmatprep.subr.mxu0 0.0
    %355 = vmatpush1.msra.mxu0 %v316
    %356 = vmatprep.subr.mxu0 0.0
    %357 = vmatpush1.msra.mxu0 %v315
    %358 = vmatprep.subr.mxu0 0.0
    %359 = vmatpush1.msra.mxu0 %v314
    %360 = vmatprep.subr.mxu0 0.0
    %361 = vmatpush1.msra.mxu0 %v313
    %362 = vmatprep.subr.mxu0 0.0
    %363 = vmatpush1.msra.mxu0 %v312
    %364 = vmatprep.subr.mxu0 0.0
    %365 = vmatpush1.msra.mxu0 %v311
    %366 = vmatprep.subr.mxu0 0.0
    %367 = vmatpush2.msra.mxu0 0.0
    %368 = vmatprep.subr.mxu0 0.0
    %369 = vmatpush2.msra.mxu0 0.0
    %370 = vmatprep.subr.mxu0 0.0
    %371 = vmatpush2.msra.mxu0 0.0
    %372 = vmatprep.subr.mxu0 0.0
    %373 = vmatpush2.msra.mxu0 0.0
    %374 = vmatprep.subr.mxu0 0.0
    %375 = vmatpush2.msra.mxu0 0.0
    %376 = vmatprep.subr.mxu0 0.0
    %377 = vmatpush2.msra.mxu0 0.0
    %378 = vmatprep.subr.mxu0 0.0
    %379 = vmatpush2.msra.mxu0 0.0
    %380 = vmatprep.subr.mxu0 0.0
    %381 = vmatpush2.msra.mxu0 0.0
    %382 = vmatprep.subr.mxu0 0.0
    %383 = vmatpush2.msra.mxu0 0.0
    %384 = vmatprep.subr.mxu0 0.0
    %385 = vmatpush2.msra.mxu0 0.0
    %386 = vmatprep.subr.mxu0 0.0
    %387 = vmatpush2.msra.mxu0 0.0
    %388 = vmatprep.subr.mxu0 0.0
    %389 = vmatpush2.msra.mxu0 0.0
    %390 = vmatprep.subr.mxu0 0.0
    %391 = vmatpush2.msra.mxu0 0.0
    %392 = vmatprep.subr.mxu0 0.0
    %393 = vmatpush2.msra.mxu0 0.0
    %394 = vmatprep.subr.mxu0 0.0
    %395 = vmatpush2.msra.mxu0 0.0
    %396 = vmatprep.subr.mxu0 0.0
    %397 = vmatpush2.msra.mxu0 0.0
    %398 = vmatprep.mubr.f32.mxu0 0.0
    %399 = vmatmul.mubr.f32.gmra.mxu0 %v310
    %v400 = vpop.f32.mrf.mxu0
    %v401 = vadd.f32 %v332, %v400
    %v402 = vpop.f32.mrf.mxu0
    %403 = vdwg.mxu0
    %vm404 = vcmask 31744
    %405 = vst.msk [vmem:[%s10] sm:$0xff] %vm404, %v214
    %406 = vst.msk [vmem:[#allocation2] sm:$0xff] %vm45, %v401
    // Predicated region
    $region38: #{autoencoder_forward.1} parent=1 // pred_check
      _
    $region39: #{autoencoder_forward.1} parent=1 // pred_check_branch
      %408 = sbr.rel (0) target = $region41
    $region40: #{autoencoder_forward.1} parent=1 // pred_region
      %s410 = ssub.s32 128, 128
      %411 = vsyncadd [#allocation3], %s410
      %s413 = sshll.u32 [#allocation2], 4
      %s414 = int_to_ptr.vmem [resolvable:$true] %s413
      %416 = dma.vmem_to_hbm [thread:$0]  %s414, 128, %s9, [#allocation3]
    $region41: #{autoencoder_forward.1} parent=1 // pred_fallthru
      _
    // Predicated region
    $region42: #{autoencoder_forward.1} parent=1 // pred_check
      _
    $region43: #{autoencoder_forward.1} parent=1 // pred_check_branch
      %418 = sbr.rel (0) target = $region45
    $region44: #{autoencoder_forward.1} parent=1 // pred_region
      _
    $region45: #{autoencoder_forward.1} parent=1 // pred_fallthru
      _
    // Predicated region
    $region46: #{autoencoder_forward.1} parent=1 // pred_check
      _
    $region47: #{autoencoder_forward.1} parent=1 // pred_check_branch
      %420 = sbr.rel (0) target = $region49
    $region48: #{autoencoder_forward.1} parent=1 // pred_region
      %421 = dma.done [#allocation3], 128
    $region49: #{autoencoder_forward.1} parent=1 // pred_fallthru
      _
    // Predicated region
    $region50: #{autoencoder_forward.1} parent=1 // pred_check
      _
    $region51: #{autoencoder_forward.1} parent=1 // pred_check_branch
      %423 = sbr.rel (0) target = $region53
    $region52: #{autoencoder_forward.1} parent=1 // pred_region
      _
    $region53: #{autoencoder_forward.1} parent=1 // pred_fallthru
      _
    %424 = vsyncpa [#allocation3], 1

</llo_original>
